<compile_context>
chip_gen: v6e
topology: v6e:2x2x1
jax: 0.10.0
libtpu: 0.0.40
codegen_flags: <defaults>
</compile_context>

<pallas_src>
import numpy as np
import jax
import jax.numpy as jnp
from jax import lax
from jax.experimental import pallas as pl
from jax.experimental.pallas import tpu as pltpu


# ----------------------------- Pallas kernel ------------------------------- #

def _similarity_kernel(img_ref, rhs_ref, out_ref):
    """Row-normalize both operands and compute img_n @ rhs_n^T on the MXU.

    img_ref : (TB, D)  f32   tile of image embeddings
    rhs_ref : (NP, D)  f32   [txt ; txt_cr ; zero-pad] rows (NP multiple of 128)
    out_ref : (TB, NP) f32   [sim | sim_cr | 0]  lane-dense output slab
    """
    img = img_ref[...]
    rhs = rhs_ref[...]

    # L2 row normalization via rsqrt (EUP slot) instead of sqrt + divide (VALU).
    # NOTE: PyTorch uses x / (||x|| + 1e-8); x * rsqrt(||x||^2 + 1e-16) is
    # numerically equivalent for non-degenerate rows and yields 0 for zero rows.
    img_n = img * lax.rsqrt(jnp.sum(img * img, axis=1, keepdims=True) + 1e-16)
    rhs_n = rhs * lax.rsqrt(jnp.sum(rhs * rhs, axis=1, keepdims=True) + 1e-16)

    # Contract the LAST dims of both operands directly (no in-VMEM transpose);
    # bf16 operands hit the native MXU fast path on v5e/v6e/v7x, f32 accumulate.
    out_ref[...] = lax.dot_general(
        img_n.astype(jnp.bfloat16),
        rhs_n.astype(jnp.bfloat16),
        dimension_numbers=(((1,), (1,)), ((), ())),
        preferred_element_type=jnp.float32,
    )


def compute_similarities(img, txt, txt_cr):
    """Return a (B, NP) f32 slab: cols [0:B) = sim, [B:2B) = sim_cr, rest 0.

    The matched-pair similarities are exactly the diagonals of those blocks,
    so no separate (B, 1) outputs (which would be masked partial stores).
    """
    B, D = img.shape
    n_cols = 2 * B
    n_pad = max(128, ((n_cols + 127) // 128) * 128)   # lane-dense output width

    # Pack both text matrices (plus zero rows) into one RHS so a single MXU
    # pass produces both similarity matrices; zero rows give zero columns.
    rhs = jnp.concatenate([txt, txt_cr], axis=0)
    if n_pad > n_cols:
        rhs = jnp.pad(rhs, ((0, n_pad - n_cols), (0, 0)))

    tb = B if B <= 256 else 256          # row tile (whole batch at toy sizes)
    grid = (pl.cdiv(B, tb),)
    # TODO(synk): for very large D, add a D-reduction grid axis with a VMEM
    # accumulator (and a norm pre-pass) sized for v7x's 64 MiB VMEM.
    return pl.pallas_call(
        _similarity_kernel,
        grid=grid,
        out_shape=jax.ShapeDtypeStruct((B, n_pad), jnp.float32),
        in_specs=[pl.BlockSpec((tb, D), lambda i: (i, 0)),
                  pl.BlockSpec((n_pad, D), lambda i: (0, 0))],
        out_specs=pl.BlockSpec((tb, n_pad), lambda i: (i, 0)),
        compiler_params=pltpu.CompilerParams(
            dimension_semantics=("parallel",)),   # shards rows across v7x TCs
    )(img, rhs)


# ------------------------ Host-side CRLoss replication --------------------- #

def calculate_margin_cr(similarity_match_cr, similarity_match, auto_margin_flag, margin):
    if auto_margin_flag:
        denom = np.maximum(np.abs(similarity_match), 1e-12)   # guard div-by-zero
        lambda_cr = np.abs(similarity_match_cr) / denom
        ones = np.ones_like(lambda_cr)
        data = (ones >= lambda_cr).astype(np.float32)
        data_2 = (lambda_cr >= ones).astype(np.float32)
        lambda_cr = data * lambda_cr + data_2
        margin_cr = (lambda_cr + 1) * margin / 2.0
    else:
        margin_cr = margin / 2.0
    return margin_cr


class CRLossPallas:
    """Replicates CRLoss.forward; the similarity hot path runs in Pallas."""

    def __init__(self, margin, batch_size, cr_beta):
        self.margin = np.array([margin]).repeat(batch_size)
        self.beta = cr_beta
        self.batch_size = batch_size

    # TODO(synk): semi-hard negative mining uses host-side np.random.choice on
    # data-dependent, variable-length index sets; no clean Pallas equivalent.
    def semi_hard_negative(self, loss, margin):
        negative_index = np.where(np.logical_and(loss < margin, loss > 0))[0]
        return np.random.choice(negative_index) if len(negative_index) > 0 else None

    def get_triplets(self, similarity, labels, auto_margin_flag, margin):
        similarity = np.asarray(similarity)
        labels = np.asarray(labels)
        triplets = []
        for idx, label in enumerate(labels):
            if margin[idx] >= 0.16 or auto_margin_flag is False:
                negative = np.where(labels != label)[0]
                ap_sim = similarity[idx, idx]
                loss = similarity[idx, negative] - ap_sim + margin[idx]
                negative_index = self.semi_hard_negative(loss, margin[idx])
                if negative_index is not None:
                    triplets.append([idx, idx, negative[negative_index]])
        if len(triplets) == 0:
            # Robust fallback (original reuses stale loop vars which can
            # NameError): use the last anchor with its first negative.
            idx = len(labels) - 1
            negative = np.where(labels != labels[idx])[0]
            triplets.append([idx, idx, negative[0]])
        triplets = np.array(triplets, dtype=np.int64)
        return_margin = np.asarray(margin[triplets[:, 0]], dtype=np.float32)
        return triplets, return_margin

    @staticmethod
    def _anchor_loss(similarity_np, triplets, margins):
        # Gather + relu + sum over at most B floats: host numpy beats a kernel
        # launch + two H2D transfers by orders of magnitude at this size.
        ap = similarity_np[triplets[:, 0], triplets[:, 1]]
        an = similarity_np[triplets[:, 0], triplets[:, 2]]
        return float(np.sum(np.maximum(margins - ap + an, 0.0)))

    def calculate_loss(self, similarity_np, label, auto_margin_flag, margin):
        image_triplets, img_margin = self.get_triplets(similarity_np, label,
                                                       auto_margin_flag, margin)
        text_triplets, txt_margin = self.get_triplets(similarity_np.T, label,
                                                      auto_margin_flag, margin)
        image_anchor_loss = self._anchor_loss(similarity_np, image_triplets, img_margin)
        text_anchor_loss = self._anchor_loss(similarity_np.T, text_triplets, txt_margin)
        return image_anchor_loss + text_anchor_loss

    def forward(self, img, txt, txt_cr, labels, auto_margin_flag):
        B = img.shape[0]
        slab = compute_similarities(img, txt, txt_cr)
        # Single blocking device->host transfer for everything downstream.
        slab_np = np.asarray(jax.device_get(slab))
        sim_np = slab_np[:, :B]
        sim_cr_np = slab_np[:, B:2 * B]
        match_np = np.ascontiguousarray(np.diagonal(sim_np))
        match_cr_np = np.ascontiguousarray(np.diagonal(sim_cr_np))

        margin_cr = calculate_margin_cr(match_cr_np, match_np,
                                        auto_margin_flag, self.margin)
        cr_loss = (self.calculate_loss(sim_np, labels, auto_margin_flag, self.margin)
                   + self.beta * self.calculate_loss(sim_cr_np, labels,
                                                     auto_margin_flag, margin_cr))
        return jnp.float32(cr_loss)


# ---------------------------------- main ----------------------------------- #

if __name__ == "__main__":
    B, D = 8, 128  # batch, flattened embedding dim

    key = jax.random.PRNGKey(0)
    k_img, k_txt, k_cr = jax.random.split(key, 3)
    img = jax.random.normal(k_img, (B, D), dtype=jnp.float32)
    txt = jax.random.normal(k_txt, (B, D), dtype=jnp.float32)
    txt_cr = jax.random.normal(k_cr, (B, D), dtype=jnp.float32)
    labels = np.array([0, 0, 1, 1, 2, 2, 3, 3], dtype=np.int64)

    np.random.seed(0)  # deterministic semi-hard negative choices

    loss_mod = CRLossPallas(margin=0.2, batch_size=B, cr_beta=0.1)
    cr_loss = loss_mod.forward(img, txt, txt_cr, labels, auto_margin_flag=False)
    jax.block_until_ready(cr_loss)
    print("KERNEL_OK")
</pallas_src>

<mosaic_0001>
module attributes {stable_mosaic.version = 11 : i64} {
  func.func @_similarity_kernel(%arg0: i32, %arg1: memref<8x128xf32, #tpu.memory_space<vmem>>, %arg2: memref<128x128xf32, #tpu.memory_space<vmem>>, %arg3: memref<8x128xf32, #tpu.memory_space<vmem>>) attributes {dimension_semantics = [#tpu.dimension_semantics<parallel>], iteration_bounds = array<i64: 1>, scalar_prefetch = 0 : i64, scratch_operands = 0 : i64, tpu.core_type = #tpu.core_type<tc>, window_params = [{transform_indices = @transform_0, window_bounds = array<i64: 8, 128>}, {pipeline_mode = #tpu.pipeline_mode<synchronous>, transform_indices = @transform_1, window_bounds = array<i64: 128, 128>}, {transform_indices = @transform_2, window_bounds = array<i64: 8, 128>}]} {
    %c0 = arith.constant 0 : index
    %c0_0 = arith.constant 0 : index
    %0 = vector.load %arg1[%c0, %c0_0] : memref<8x128xf32, #tpu.memory_space<vmem>>, vector<8x128xf32>
    %c0_1 = arith.constant 0 : index
    %c0_2 = arith.constant 0 : index
    %1 = vector.load %arg2[%c0_1, %c0_2] : memref<128x128xf32, #tpu.memory_space<vmem>>, vector<128x128xf32>
    %2 = arith.mulf %0, %0 : vector<8x128xf32>
    %cst = arith.constant dense<0.000000e+00> : vector<8xf32>
    %3 = vector.multi_reduction <add>, %2, %cst [1] : vector<8x128xf32> to vector<8xf32>
    %4 = vector.shape_cast %3 : vector<8xf32> to vector<8x1xf32>
    %cst_3 = arith.constant 1.000000e-16 : f32
    %5 = vector.broadcast %cst_3 : f32 to vector<8x1xf32>
    %6 = arith.addf %4, %5 : vector<8x1xf32>
    %7 = math.rsqrt %6 : vector<8x1xf32>
    %8 = vector.broadcast %7 : vector<8x1xf32> to vector<8x128xf32>
    %9 = arith.mulf %0, %8 : vector<8x128xf32>
    %10 = arith.mulf %1, %1 : vector<128x128xf32>
    %cst_4 = arith.constant dense<0.000000e+00> : vector<128xf32>
    %11 = vector.multi_reduction <add>, %10, %cst_4 [1] : vector<128x128xf32> to vector<128xf32>
    %12 = vector.shape_cast %11 : vector<128xf32> to vector<128x1xf32>
    %cst_5 = arith.constant 1.000000e-16 : f32
    %13 = vector.broadcast %cst_5 : f32 to vector<128x1xf32>
    %14 = arith.addf %12, %13 : vector<128x1xf32>
    %15 = math.rsqrt %14 : vector<128x1xf32>
    %16 = vector.broadcast %15 : vector<128x1xf32> to vector<128x128xf32>
    %17 = arith.mulf %1, %16 : vector<128x128xf32>
    %18 = arith.truncf %9 : vector<8x128xf32> to vector<8x128xbf16>
    %19 = arith.truncf %17 : vector<128x128xf32> to vector<128x128xbf16>
    %cst_6 = arith.constant dense<0.000000e+00> : vector<8x128xf32>
    %20 = tpu.matmul %18, %19, %cst_6 {dimension_numbers = #tpu.dot_dimension_numbers<[1], [1], [0], [0], [0, 0, 1, 0], [], []>} : vector<8x128xbf16>, vector<128x128xbf16>, vector<8x128xf32> -> vector<8x128xf32>
    %c0_7 = arith.constant 0 : index
    %c0_8 = arith.constant 0 : index
    %21 = vector.load %arg3[%c0_7, %c0_8] : memref<8x128xf32, #tpu.memory_space<vmem>>, vector<8x128xf32>
    tpu.vector_store %arg3[%c0_7, %c0_8], %20 {strides = array<i32>} : memref<8x128xf32, #tpu.memory_space<vmem>>, vector<8x128xf32>,
    return
  }
  func.func @transform_0(%arg0: i32) -> (i32, i32) {
    %c0_i32 = arith.constant 0 : i32
    %c0_i32_0 = arith.constant 0 : i32
    return %arg0, %c0_i32 : i32, i32
  }
  func.func @transform_1(%arg0: i32) -> (i32, i32) {
    %c0_i32 = arith.constant 0 : i32
    %c0_i32_0 = arith.constant 0 : i32
    %c0_i32_1 = arith.constant 0 : i32
    return %c0_i32, %c0_i32_0 : i32, i32
  }
  func.func @transform_2(%arg0: i32) -> (i32, i32) {
    %c0_i32 = arith.constant 0 : i32
    %c0_i32_0 = arith.constant 0 : i32
    return %arg0, %c0_i32 : i32, i32
  }
}

</mosaic_0001>

<llo_original>
// kernel: tpu_custom_call.1
$region0: #{tpu_custom_call.1}
  #allocation0 [shape = 'u32[]', space=smem, size = 0x4, offset = 0x4, fixed_abs, tag = 'smem constant byte address 0x4 - core index']
  #allocation1 [shape = 'u32[144,128]{1,0:T(1,128)}', space=vmem, size = 0x12000, scoped, tag = 'internal scratch']
  %s0 = inlined_call_operand.hbm [shape: f32[8,128], index: 0, kind: input, shape index: {}]
  %s1 = inlined_call_operand.hbm [shape: f32[128,128], index: 1, kind: input, shape index: {}]
  %s2 = inlined_call_operand.hbm [shape: f32[8,128], index: 2, kind: output, shape index: {}]
  %s3 = sld [smem:[#allocation0]]
  $region26: #{tpu_custom_call.1} parent=0
    _
  %s5 = ssub.s32 1, %s3
  %s6 = scalar_select 0, %s5, %s3
  $region1: #{tpu_custom_call.1} parent=0
    #allocation2 [shape = 'u8[4096]{0}', space=vmem, size = 0x1000, scoped, tag = 'input window, operand 0, single buffered']
    #allocation3 [shape = 's32[1]{0}', space=sflag, size = 0x4, scoped, tag = 'scoped memory for tpu_custom_call.1']
    #allocation4 [shape = 's32[1]{0}', space=sflag, size = 0x4, scoped, tag = 'scoped memory for tpu_custom_call.1']
    #allocation5 [shape = 'u8[65536]{0}', space=vmem, size = 0x10000, scoped, tag = 'input window, operand 1, single buffered']
    #allocation6 [shape = 's32[1]{0}', space=sflag, size = 0x4, scoped, tag = 'scoped memory for tpu_custom_call.1']
    #allocation7 [shape = 'u8[4096]{0}', space=vmem, size = 0x1000, scoped, tag = 'output window, operand 0, single buffered']
    %7 = vsyncpa [#allocation3], 0
    %8 = vsyncpa [#allocation6], 0
    %9 = vsyncpa [#allocation4], 0
    // Predicated region
    $region2: #{tpu_custom_call.1} parent=1 // pred_check
      _
    $region3: #{tpu_custom_call.1} parent=1 // pred_check_branch
      %11 = sbr.rel (0) target = $region5
    $region4: #{tpu_custom_call.1} parent=1 // pred_region
      %s13 = ssub.s32 128, 128
      %14 = vsyncadd [#allocation3], %s13
      %s16 = sshll.u32 [#allocation2], 4
      %s17 = int_to_ptr.vmem [resolvable:$true] %s16
      %19 = dma.hbm_to_vmem [thread:$0]  %s0, 128, %s17, [#allocation3]
    $region5: #{tpu_custom_call.1} parent=1 // pred_fallthru
      _
    // Predicated region
    $region6: #{tpu_custom_call.1} parent=1 // pred_check
      _
    $region7: #{tpu_custom_call.1} parent=1 // pred_check_branch
      %21 = sbr.rel (0) target = $region9
    $region8: #{tpu_custom_call.1} parent=1 // pred_region
      %s23 = ssub.s32 2048, 2048
      %24 = vsyncadd [#allocation6], %s23
      %s25 = sshll.u32 [#allocation5], 4
      %s26 = int_to_ptr.vmem [resolvable:$true] %s25
      %31 = dma.hbm_to_vmem [thread:$0]  %s1, 2048, %s26, [#allocation6], 128, 128, 8
    $region9: #{tpu_custom_call.1} parent=1 // pred_fallthru
      _
    // Predicated region
    $region10: #{tpu_custom_call.1} parent=1 // pred_check
      _
    $region11: #{tpu_custom_call.1} parent=1 // pred_check_branch
      %33 = sbr.rel (0) target = $region13
    $region12: #{tpu_custom_call.1} parent=1 // pred_region
      %34 = dma.done [#allocation3], 128
    $region13: #{tpu_custom_call.1} parent=1 // pred_fallthru
      _
    // Predicated region
    $region14: #{tpu_custom_call.1} parent=1 // pred_check
      _
    $region15: #{tpu_custom_call.1} parent=1 // pred_check_branch
      %36 = sbr.rel (0) target = $region17
    $region16: #{tpu_custom_call.1} parent=1 // pred_region
      %37 = dma.done [#allocation6], 2048
    $region17: #{tpu_custom_call.1} parent=1 // pred_fallthru
      _
    %v39 = vld [vmem:[#allocation2] sm:$0xff]
    %v40 = vld [vmem:[#allocation5] sm:$0xff]
    %v41 = vld [vmem:[#allocation5 + $0x8] sm:$0xff]
    %v42 = vld [vmem:[#allocation5 + $0x10] sm:$0xff]
    %v43 = vld [vmem:[#allocation5 + $0x18] sm:$0xff]
    %v44 = vld [vmem:[#allocation5 + $0x20] sm:$0xff]
    %v45 = vld [vmem:[#allocation5 + $0x28] sm:$0xff]
    %v46 = vld [vmem:[#allocation5 + $0x30] sm:$0xff]
    %v47 = vld [vmem:[#allocation5 + $0x38] sm:$0xff]
    %v48 = vld [vmem:[#allocation5 + $0x40] sm:$0xff]
    %v49 = vld [vmem:[#allocation5 + $0x48] sm:$0xff]
    %v50 = vld [vmem:[#allocation5 + $0x50] sm:$0xff]
    %v51 = vld [vmem:[#allocation5 + $0x58] sm:$0xff]
    %v52 = vld [vmem:[#allocation5 + $0x60] sm:$0xff]
    %v53 = vld [vmem:[#allocation5 + $0x68] sm:$0xff]
    %v54 = vld [vmem:[#allocation5 + $0x70] sm:$0xff]
    %v55 = vld [vmem:[#allocation5 + $0x78] sm:$0xff]
    %v56 = vmul.f32 %v39, %v39
    %57 = vadd.xlane.f32.xlu0 %v56
    %v58 = vpop.xlane.xlu0 %57
    %v59 = vadd.f32 %v58, 1e-16
    %v60 = vrsqrt.pop %v59
    %v61 = vmul.f32 %v39, %v60
    %v62 = vmul.f32 %v40, %v40
    %v63 = vmul.f32 %v41, %v41
    %v64 = vmul.f32 %v42, %v42
    %v65 = vmul.f32 %v43, %v43
    %v66 = vmul.f32 %v44, %v44
    %v67 = vmul.f32 %v45, %v45
    %v68 = vmul.f32 %v46, %v46
    %v69 = vmul.f32 %v47, %v47
    %v70 = vmul.f32 %v48, %v48
    %v71 = vmul.f32 %v49, %v49
    %v72 = vmul.f32 %v50, %v50
    %v73 = vmul.f32 %v51, %v51
    %v74 = vmul.f32 %v52, %v52
    %v75 = vmul.f32 %v53, %v53
    %v76 = vmul.f32 %v54, %v54
    %v77 = vmul.f32 %v55, %v55
    %78 = vadd.xlane.f32.xlu0 %v62
    %v79 = vpop.xlane.xlu0 %78
    %80 = vadd.xlane.f32.xlu0 %v63
    %v81 = vpop.xlane.xlu0 %80
    %82 = vadd.xlane.f32.xlu0 %v64
    %v83 = vpop.xlane.xlu0 %82
    %84 = vadd.xlane.f32.xlu0 %v65
    %v85 = vpop.xlane.xlu0 %84
    %86 = vadd.xlane.f32.xlu0 %v66
    %v87 = vpop.xlane.xlu0 %86
    %88 = vadd.xlane.f32.xlu0 %v67
    %v89 = vpop.xlane.xlu0 %88
    %90 = vadd.xlane.f32.xlu0 %v68
    %v91 = vpop.xlane.xlu0 %90
    %92 = vadd.xlane.f32.xlu0 %v69
    %v93 = vpop.xlane.xlu0 %92
    %94 = vadd.xlane.f32.xlu0 %v70
    %v95 = vpop.xlane.xlu0 %94
    %96 = vadd.xlane.f32.xlu0 %v71
    %v97 = vpop.xlane.xlu0 %96
    %98 = vadd.xlane.f32.xlu0 %v72
    %v99 = vpop.xlane.xlu0 %98
    %100 = vadd.xlane.f32.xlu0 %v73
    %v101 = vpop.xlane.xlu0 %100
    %102 = vadd.xlane.f32.xlu0 %v74
    %v103 = vpop.xlane.xlu0 %102
    %104 = vadd.xlane.f32.xlu0 %v75
    %v105 = vpop.xlane.xlu0 %104
    %106 = vadd.xlane.f32.xlu0 %v76
    %v107 = vpop.xlane.xlu0 %106
    %108 = vadd.xlane.f32.xlu0 %v77
    %v109 = vpop.xlane.xlu0 %108
    %v110 = vadd.f32 %v79, 1e-16
    %v111 = vadd.f32 %v81, 1e-16
    %v112 = vadd.f32 %v83, 1e-16
    %v113 = vadd.f32 %v85, 1e-16
    %v114 = vadd.f32 %v87, 1e-16
    %v115 = vadd.f32 %v89, 1e-16
    %v116 = vadd.f32 %v91, 1e-16
    %v117 = vadd.f32 %v93, 1e-16
    %v118 = vadd.f32 %v95, 1e-16
    %v119 = vadd.f32 %v97, 1e-16
    %v120 = vadd.f32 %v99, 1e-16
    %v121 = vadd.f32 %v101, 1e-16
    %v122 = vadd.f32 %v103, 1e-16
    %v123 = vadd.f32 %v105, 1e-16
    %v124 = vadd.f32 %v107, 1e-16
    %v125 = vadd.f32 %v109, 1e-16
    %v126 = vrsqrt.pop %v110
    %v127 = vrsqrt.pop %v111
    %v128 = vrsqrt.pop %v112
    %v129 = vrsqrt.pop %v113
    %v130 = vrsqrt.pop %v114
    %v131 = vrsqrt.pop %v115
    %v132 = vrsqrt.pop %v116
    %v133 = vrsqrt.pop %v117
    %v134 = vrsqrt.pop %v118
    %v135 = vrsqrt.pop %v119
    %v136 = vrsqrt.pop %v120
    %v137 = vrsqrt.pop %v121
    %v138 = vrsqrt.pop %v122
    %v139 = vrsqrt.pop %v123
    %v140 = vrsqrt.pop %v124
    %v141 = vrsqrt.pop %v125
    %v142 = vmul.f32 %v40, %v126
    %v143 = vmul.f32 %v41, %v127
    %v144 = vmul.f32 %v42, %v128
    %v145 = vmul.f32 %v43, %v129
    %v146 = vmul.f32 %v44, %v130
    %v147 = vmul.f32 %v45, %v131
    %v148 = vmul.f32 %v46, %v132
    %v149 = vmul.f32 %v47, %v133
    %v150 = vmul.f32 %v48, %v134
    %v151 = vmul.f32 %v49, %v135
    %v152 = vmul.f32 %v50, %v136
    %v153 = vmul.f32 %v51, %v137
    %v154 = vmul.f32 %v52, %v138
    %v155 = vmul.f32 %v53, %v139
    %v156 = vmul.f32 %v54, %v140
    %v157 = vmul.f32 %v55, %v141
    %v158 = vpack.c.bf16 %v61, %v61
    %v159 = vpack.c.bf16 %v143, %v142
    %v160 = vpack.c.bf16 %v145, %v144
    %v161 = vpack.c.bf16 %v147, %v146
    %v162 = vpack.c.bf16 %v149, %v148
    %v163 = vpack.c.bf16 %v151, %v150
    %v164 = vpack.c.bf16 %v153, %v152
    %v165 = vpack.c.bf16 %v155, %v154
    %v166 = vpack.c.bf16 %v157, %v156
    %167 = vmatprep.subr.bf16.mxu0 0
    %168 = vmatpush1.bf16.xpose.msra.mxu0 %v166
    %169 = vmatprep.subr.bf16.mxu0 0
    %170 = vmatpush1.bf16.xpose.msra.mxu0 %v165
    %171 = vmatprep.subr.bf16.mxu0 0
    %172 = vmatpush1.bf16.xpose.msra.mxu0 %v164
    %173 = vmatprep.subr.bf16.mxu0 0
    %174 = vmatpush1.bf16.xpose.msra.mxu0 %v163
    %175 = vmatprep.subr.bf16.mxu0 0
    %176 = vmatpush1.bf16.xpose.msra.mxu0 %v162
    %177 = vmatprep.subr.bf16.mxu0 0
    %178 = vmatpush1.bf16.xpose.msra.mxu0 %v161
    %179 = vmatprep.subr.bf16.mxu0 0
    %180 = vmatpush1.bf16.xpose.msra.mxu0 %v160
    %181 = vmatprep.subr.bf16.mxu0 0
    %182 = vmatpush1.bf16.xpose.msra.mxu0 %v159
    %183 = vmatprep.subr.bf16.mxu0 0
    %184 = vmatpush2.bf16.xpose.msra.mxu0 0
    %185 = vmatprep.subr.bf16.mxu0 0
    %186 = vmatpush2.bf16.xpose.msra.mxu0 0
    %187 = vmatprep.subr.bf16.mxu0 0
    %188 = vmatpush2.bf16.xpose.msra.mxu0 0
    %189 = vmatprep.subr.bf16.mxu0 0
    %190 = vmatpush2.bf16.xpose.msra.mxu0 0
    %191 = vmatprep.subr.bf16.mxu0 0
    %192 = vmatpush2.bf16.xpose.msra.mxu0 0
    %193 = vmatprep.subr.bf16.mxu0 0
    %194 = vmatpush2.bf16.xpose.msra.mxu0 0
    %195 = vmatprep.subr.bf16.mxu0 0
    %196 = vmatpush2.bf16.xpose.msra.mxu0 0
    %197 = vmatprep.subr.bf16.mxu0 0
    %198 = vmatpush2.bf16.xpose.msra.mxu0 0
    %199 = vmatprep.mubr.bf16.mxu0 0
    %200 = vmatmul.mubr.bf16.gmra.mxu0 %v158
    %v201 = vpop.f32.mrf.mxu0
    %v202 = vadd.f32 0.0, %v201
    %v203 = vpop.f32.mrf.mxu0
    %v204 = vpop.f32.mrf.mxu0
    %v205 = vpop.f32.mrf.mxu0
    %206 = vdwg.mxu0
    %207 = vst [vmem:[#allocation7] sm:$0xff] %v202
    // Predicated region
    $region18: #{tpu_custom_call.1} parent=1 // pred_check
      _
    $region19: #{tpu_custom_call.1} parent=1 // pred_check_branch
      %209 = sbr.rel (0) target = $region21
    $region20: #{tpu_custom_call.1} parent=1 // pred_region
      %s211 = ssub.s32 128, 128
      %212 = vsyncadd [#allocation4], %s211
      %s214 = sshll.u32 [#allocation7], 4
      %s215 = int_to_ptr.vmem [resolvable:$true] %s214
      %217 = dma.vmem_to_hbm [thread:$0]  %s215, 128, %s2, [#allocation4]
    $region21: #{tpu_custom_call.1} parent=1 // pred_fallthru
      _
    // Predicated region
    $region22: #{tpu_custom_call.1} parent=1 // pred_check
      _
    $region23: #{tpu_custom_call.1} parent=1 // pred_check_branch
      %219 = sbr.rel (0) target = $region25
    $region24: #{tpu_custom_call.1} parent=1 // pred_region
      %220 = dma.done [#allocation4], 128
    $region25: #{tpu_custom_call.1} parent=1 // pred_fallthru
      _
    %221 = vsyncpa [#allocation3], 1
    %222 = vsyncpa [#allocation6], 1
    %223 = vsyncpa [#allocation4], 1

</llo_original>
